<compile_context>
chip_gen: v6e
topology: v6e:2x2x1
jax: 0.10.0
libtpu: 0.0.40
codegen_flags: <defaults>
</compile_context>

<pallas_src>
import jax
import jax.numpy as jnp
from jax.experimental import pallas as pl
from jax.experimental.pallas import tpu as pltpu

LANE_WIDTH = 512          # last dim of the lane-dense slab (multiple of 128)
TILE_ROWS = 1024          # (1024, 512) f32 tile = 2 MiB; double-buffered
                          # in+out ~ 8 MiB << scoped VMEM on all generations
SMALL_N_THRESHOLD = 1 << 16  # below this, a fused XLA affine beats a kernel launch


def _round_up(a, b):
    return ((a + b - 1) // b) * b


def affine_kernel(scale_ref, shift_ref, x_ref, o_ref):
    # scale/shift: (1,) f32 scalars in SMEM.  x/o: (tile_rows, LANE_WIDTH)
    # VMEM tiles in the caller's dtype.  Upcast in-register, FMA on the VPU,
    # store back in the I/O dtype (keeps HBM traffic at native width).
    x = x_ref[...].astype(jnp.float32)
    o_ref[...] = (x * scale_ref[0] + shift_ref[0]).astype(o_ref.dtype)


def mlp_forward(x, w1, b1, w2, b2, *, force_pallas=False,
                tile_rows=TILE_ROWS, lane_width=LANE_WIDTH):
    """x: (N, 1). w1: (5, 1), b1: (5,), w2: (1, 5), b2: (1,) — torch Linear layout."""
    n = x.shape[0]
    out_dtype = x.dtype

    # Exact algebraic collapse of fc2(fc1(x)) (no activation in between).
    # TODO(synk): if an activation is ever inserted between fc1/fc2 this
    # collapse no longer applies and the kernel must do the two matmuls.
    w1f, b1f, w2f, b2f = (a.astype(jnp.float32) for a in (w1, b1, w2, b2))
    scale = (w2f @ w1f).reshape(1)       # a = w2 @ w1        -> (1,)
    shift = (w2f @ b1f + b2f).reshape(1)  # c = w2 @ b1 + b2   -> (1,)

    if n == 0:
        return jnp.zeros((0, 1), out_dtype)

    # Small-N fast path: a single fused XLA op; the real workload (N ~ 63)
    # is dominated by launch latency, not bandwidth.
    if n < SMALL_N_THRESHOLD and not force_pallas:
        y = x.astype(jnp.float32).reshape(n) * scale + shift
        return y.astype(out_dtype).reshape(n, 1)

    # ---- Pallas streaming path (large N) --------------------------------
    # Lane-dense layout: (N, 1) -> (rows, lane_width). Pad only to the next
    # lane_width multiple (< lane_width extra elements); ragged grid edges are
    # handled by Pallas' clipped block DMAs.
    rows = pl.cdiv(n, lane_width)
    padded_n = rows * lane_width
    xf = x.reshape(-1)
    if padded_n != n:
        xf = jnp.pad(xf, (0, padded_n - n))
    xp = xf.reshape(rows, lane_width)

    # Tile-row choice: as big as possible, but force >= 2 grid steps when the
    # batch is big enough so v7x's two TensorCores can each take a shard.
    if rows <= tile_rows:
        tr = rows if rows < 16 else _round_up(pl.cdiv(rows, 2), 8)
    else:
        tr = tile_rows
    grid_rows = pl.cdiv(rows, tr)

    itemsize = jnp.dtype(out_dtype).itemsize
    cost = pl.CostEstimate(
        flops=2 * padded_n,
        transcendentals=0,
        bytes_accessed=2 * padded_n * itemsize,
    )

    out = pl.pallas_call(
        affine_kernel,
        out_shape=jax.ShapeDtypeStruct((rows, lane_width), out_dtype),
        grid=(grid_rows,),
        in_specs=[
            pl.BlockSpec(memory_space=pltpu.MemorySpace.SMEM),    # scale (1,)
            pl.BlockSpec(memory_space=pltpu.MemorySpace.SMEM),    # shift (1,)
            pl.BlockSpec((tr, lane_width), lambda i: (i, 0)),     # x tiles
        ],
        out_specs=pl.BlockSpec((tr, lane_width), lambda i: (i, 0)),
        compiler_params=pltpu.CompilerParams(
            dimension_semantics=("parallel",),
        ),
        cost_estimate=cost,
        # xp is a wrapper-local temporary of identical shape/dtype: reuse its
        # HBM buffer for the output instead of allocating a second slab.
        input_output_aliases={2: 0},
    )(scale, shift, xp)

    # Strip the tail padding and restore the (N, 1) module output shape.
    return out.reshape(-1)[:n].reshape(n, 1)


if __name__ == "__main__":
    key = jax.random.PRNGKey(0)
    kx, k1, k2, k3, k4, kx2 = jax.random.split(key, 6)

    # Same parameter shapes as nn.Linear(1, 5) / nn.Linear(5, 1); mimic
    # PyTorch's U(-1/sqrt(fan_in), 1/sqrt(fan_in)) init bounds.
    w1 = jax.random.uniform(k1, (5, 1), jnp.float32, minval=-1.0, maxval=1.0)
    b1 = jax.random.uniform(k2, (5,), jnp.float32, minval=-1.0, maxval=1.0)
    bound2 = 1.0 / jnp.sqrt(5.0)
    w2 = jax.random.uniform(k3, (1, 5), jnp.float32, minval=-bound2, maxval=bound2)
    b2 = jax.random.uniform(k4, (1,), jnp.float32, minval=-bound2, maxval=bound2)

    def torch_ref(xq):
        return (xq.astype(jnp.float32) @ w1.T + b1) @ w2.T + b2

    # 1) Dataset-sized batch (N=8): exercises the small-N fused-XLA fast path.
    x_small = jax.random.normal(kx, (8, 1), jnp.float32)
    out_small = jax.block_until_ready(mlp_forward(x_small, w1, b1, w2, b2))
    assert out_small.shape == (8, 1) and out_small.dtype == jnp.float32
    assert jnp.allclose(out_small, torch_ref(x_small), atol=1e-5, rtol=1e-5)

    # 2) Larger ragged batch forced through the Pallas kernel:
    #    rows=41, tile_rows=24 -> 2 grid steps with a clipped edge block.
    n_big = 40 * LANE_WIDTH + 37
    x_big = jax.random.normal(kx2, (n_big, 1), jnp.float32)
    out_big = jax.block_until_ready(
        mlp_forward(x_big, w1, b1, w2, b2, force_pallas=True))
    assert out_big.shape == (n_big, 1) and out_big.dtype == jnp.float32
    assert jnp.allclose(out_big, torch_ref(x_big), atol=1e-5, rtol=1e-5)

    # 3) bf16 passthrough: HBM I/O stays bf16, compute in f32 in-register.
    x_bf = x_big.astype(jnp.bfloat16)
    out_bf = jax.block_until_ready(
        mlp_forward(x_bf, w1, b1, w2, b2, force_pallas=True))
    assert out_bf.shape == (n_big, 1) and out_bf.dtype == jnp.bfloat16
    assert jnp.allclose(out_bf.astype(jnp.float32), torch_ref(x_bf),
                        atol=5e-2, rtol=5e-2)

    print("KERNEL_OK")
</pallas_src>

<mosaic_0001>
module attributes {stable_mosaic.version = 11 : i64} {
  func.func @affine_kernel(%arg0: i32, %arg1: memref<1xf32, #tpu.memory_space<smem>>, %arg2: memref<1xf32, #tpu.memory_space<smem>>, %arg3: memref<24x512xf32, #tpu.memory_space<vmem>>, %arg4: memref<24x512xf32, #tpu.memory_space<vmem>>) attributes {dimension_semantics = [#tpu.dimension_semantics<parallel>], iteration_bounds = array<i64: 2>, scalar_prefetch = 0 : i64, scratch_operands = 0 : i64, tpu.core_type = #tpu.core_type<tc>, window_params = [{transform_indices = @transform_0, window_bounds = array<i64: 1>}, {transform_indices = @transform_1, window_bounds = array<i64: 1>}, {transform_indices = @transform_2, window_bounds = array<i64: 24, 512>}, {transform_indices = @transform_3, window_bounds = array<i64: 24, 512>}]} {
    %c0 = arith.constant 0 : index
    %c0_0 = arith.constant 0 : index
    %0 = vector.load %arg3[%c0, %c0_0] : memref<24x512xf32, #tpu.memory_space<vmem>>, vector<24x512xf32>
    %c0_1 = arith.constant 0 : index
    %1 = memref.load %arg1[%c0_1] : memref<1xf32, #tpu.memory_space<smem>>
    %2 = vector.broadcast %1 : f32 to vector<24x512xf32>
    %3 = arith.mulf %0, %2 : vector<24x512xf32>
    %c0_2 = arith.constant 0 : index
    %4 = memref.load %arg2[%c0_2] : memref<1xf32, #tpu.memory_space<smem>>
    %5 = vector.broadcast %4 : f32 to vector<24x512xf32>
    %6 = arith.addf %3, %5 : vector<24x512xf32>
    %c0_3 = arith.constant 0 : index
    %c0_4 = arith.constant 0 : index
    %7 = vector.load %arg4[%c0_3, %c0_4] : memref<24x512xf32, #tpu.memory_space<vmem>>, vector<24x512xf32>
    tpu.vector_store %arg4[%c0_3, %c0_4], %6 {strides = array<i32>} : memref<24x512xf32, #tpu.memory_space<vmem>>, vector<24x512xf32>,
    return
  }
  func.func @transform_0(%arg0: i32) -> i32 {
    %c0_i32 = arith.constant 0 : i32
    %c0_i32_0 = arith.constant 0 : i32
    return %c0_i32 : i32
  }
  func.func @transform_1(%arg0: i32) -> i32 {
    %c0_i32 = arith.constant 0 : i32
    %c0_i32_0 = arith.constant 0 : i32
    return %c0_i32 : i32
  }
  func.func @transform_2(%arg0: i32) -> (i32, i32) {
    %c0_i32 = arith.constant 0 : i32
    %c0_i32_0 = arith.constant 0 : i32
    return %arg0, %c0_i32 : i32, i32
  }
  func.func @transform_3(%arg0: i32) -> (i32, i32) {
    %c0_i32 = arith.constant 0 : i32
    %c0_i32_0 = arith.constant 0 : i32
    return %arg0, %c0_i32 : i32, i32
  }
}

</mosaic_0001>

<llo_original>
// kernel: tpu_custom_call.1
$region0: #{tpu_custom_call.1}
  #allocation0 [shape = 'u32[]', space=smem, size = 0x4, offset = 0x4, fixed_abs, tag = 'smem constant byte address 0x4 - core index']
  #allocation1 [shape = 'u32[144,128]{1,0:T(1,128)}', space=vmem, size = 0x12000, scoped, tag = 'internal scratch']
  #allocation2 [shape = 'f32[1]{0:T(128)S(6)}', space=smem, size = 0x200, scoped, tag = 'scoped memory for tpu_custom_call.1']
  #allocation3 [shape = 'f32[1]{0:T(128)S(6)}', space=smem, size = 0x200, scoped, tag = 'scoped memory for tpu_custom_call.1']
  %s0 = inlined_call_operand.<no memory space> [shape: f32[1], index: 0, kind: input, shape index: {}]
  %s1 = inlined_call_operand.<no memory space> [shape: f32[1], index: 1, kind: input, shape index: {}]
  %s2 = inlined_call_operand.hbm [shape: f32[41,512], index: 2, kind: input, shape index: {}, may-alias: {2,3}]
  %s3 = inlined_call_operand.hbm [shape: f32[41,512], index: 3, kind: output, shape index: {}, may-alias: {2,3}]
  %s4 = sld [smem:[#allocation0]]
  $region49: #{tpu_custom_call.1} parent=0
    _
  %s6 = ssub.s32 1, %s4
  %s7 = scalar_select 0, %s6, %s4
  %8 = sst [smem:[#allocation2]] %s0
  %9 = sst [smem:[#allocation3]] %s1
  $region1: #{tpu_custom_call.1} parent=0
    #allocation4 [shape = 'u8[98304]{0}', space=vmem, size = 0x18000, scoped, tag = 'input window, operand 2']
    #allocation5 [shape = 's32[2]{0}', space=sflag, size = 0x8, scoped, tag = 'scoped memory for tpu_custom_call.1']
    #allocation6 [shape = 's32[2]{0}', space=sflag, size = 0x8, scoped, tag = 'scoped memory for tpu_custom_call.1']
    #allocation7 [shape = 'u8[98304]{0}', space=vmem, size = 0x18000, scoped, tag = 'output window, operand 0']
    %10 = vsyncpa [#allocation5], 0
    %s11 = scalar_lea.sflag [#allocation5], 1
    %12 = vsyncpa %s11, 0
    %13 = vsyncpa [#allocation6], 0
    %s14 = scalar_lea.sflag [#allocation6], 1
    %15 = vsyncpa %s14, 0
    loop: start=0, step=1, limit=4
    $region2: #{tpu_custom_call.1} parent=1 // loop_pre_header
      _
    $region3: #{tpu_custom_call.1} parent=1 // loop_header
      %s17 = sphi 0, %s21
      %p18 = scmp.ge.s32.totalorder %s17, 4
      %s25 = sphi 0, %s25
      %s27 = sphi 0, %s25
      %s28 = sphi 0, %s27
      %s42 = sphi 0, %s28
      %s46 = sphi 0, %s46
      %s48 = sphi 0, %s46
      %s49 = sphi 0, %s48
      %s63 = sphi 0, %s49
      %s69 = sphi 0, %s71
      %s72 = sphi 0, %s69
      %s73 = sphi 0, %s72
      %s89 = sphi 0, %s73
      %s95 = sphi 0, %s97
      %s98 = sphi 0, %s95
      %s99 = sphi 0, %s98
      %s115 = sphi 0, %s99
    $region4: #{tpu_custom_call.1} parent=1 // loop_header_branch
      %20 = sbr.rel (%p18) target = $region8
    $region5: #{tpu_custom_call.1} parent=1 // loop_body
      %s22 = ssub.s32 %s17, 1
      %s23 = ssub.s32 %s17, 2
      %s24 = sadd.s32 %s17, 1
      %s26 = sadd.s32 %s25, 1
      %p29 = scmp.eq.s32.totalorder %s17, 1
      %p30 = scmp.ne.s32.totalorder %s25, %s27
      %p31 = scmp.eq.s32.totalorder %s17, 0
      %p32 = por %p30, %p31
      %p33 = scmp.ne.s32.totalorder %s25, %s27
      %p34 = scmp.eq.s32.totalorder %s22, 1
      %p35 = por %p33, %p34
      %p36 = scmp.ne.s32.totalorder %s27, %s28
      %p37 = scmp.eq.s32.totalorder %s22, 0
      %p38 = por %p36, %p37
      %p39 = scmp.ne.s32.totalorder %s27, %s28
      %p40 = scmp.eq.s32.totalorder %s23, 1
      %p41 = por %p39, %p40
      %p43 = scmp.ne.s32.totalorder %s28, %s42
      %p44 = scmp.eq.s32.totalorder %s23, 0
      %p45 = por %p43, %p44
      %s47 = sadd.s32 %s46, 1
      %p50 = scmp.eq.s32.totalorder %s17, 1
      %p51 = scmp.ne.s32.totalorder %s46, %s48
      %p52 = scmp.eq.s32.totalorder %s17, 0
      %p53 = por %p51, %p52
      %p54 = scmp.ne.s32.totalorder %s46, %s48
      %p55 = scmp.eq.s32.totalorder %s22, 1
      %p56 = por %p54, %p55
      %p57 = scmp.ne.s32.totalorder %s48, %s49
      %p58 = scmp.eq.s32.totalorder %s22, 0
      %p59 = por %p57, %p58
      %p60 = scmp.ne.s32.totalorder %s48, %s49
      %p61 = scmp.eq.s32.totalorder %s23, 1
      %p62 = por %p60, %p61
      %p64 = scmp.ne.s32.totalorder %s49, %s63
      %p65 = scmp.eq.s32.totalorder %s23, 0
      %p66 = por %p64, %p65
      %s67 = ssub.s32 %s17, %s24
      %p68 = scmp.eq.s32.totalorder %s67, 0
      %s70 = sadd.s32 %s69, 1
      %s71 = scalar_select %p68, %s69, %s70
      %p74 = pneg %p68
      %p75 = scmp.eq.s32.totalorder %s17, 1
      %p76 = por %p74, %p75
      %p77 = scmp.ne.s32.totalorder %s69, %s72
      %p78 = scmp.eq.s32.totalorder %s17, 0
      %p79 = por %p77, %p78
      %p80 = scmp.ne.s32.totalorder %s69, %s72
      %p81 = scmp.eq.s32.totalorder %s22, 1
      %p82 = por %p80, %p81
      %p83 = scmp.ne.s32.totalorder %s72, %s73
      %p84 = scmp.eq.s32.totalorder %s22, 0
      %p85 = por %p83, %p84
      %p86 = scmp.ne.s32.totalorder %s72, %s73
      %p87 = scmp.eq.s32.totalorder %s23, 1
      %p88 = por %p86, %p87
      %p90 = scmp.ne.s32.totalorder %s73, %s89
      %p91 = scmp.eq.s32.totalorder %s23, 0
      %p92 = por %p90, %p91
      %s93 = ssub.s32 %s17, %s24
      %p94 = scmp.eq.s32.totalorder %s93, 0
      %s96 = sadd.s32 %s95, 1
      %s97 = scalar_select %p94, %s95, %s96
      %p100 = pneg %p94
      %p101 = scmp.eq.s32.totalorder %s17, 1
      %p102 = por %p100, %p101
      %p103 = scmp.ne.s32.totalorder %s95, %s98
      %p104 = scmp.eq.s32.totalorder %s17, 0
      %p105 = por %p103, %p104
      %p106 = scmp.ne.s32.totalorder %s95, %s98
      %p107 = scmp.eq.s32.totalorder %s22, 1
      %p108 = por %p106, %p107
      %p109 = scmp.ne.s32.totalorder %s98, %s99
      %p110 = scmp.eq.s32.totalorder %s22, 0
      %p111 = por %p109, %p110
      %p112 = scmp.ne.s32.totalorder %s98, %s99
      %p113 = scmp.eq.s32.totalorder %s23, 1
      %p114 = por %p112, %p113
      %p116 = scmp.ne.s32.totalorder %s99, %s115
      %p117 = scmp.eq.s32.totalorder %s23, 0
      %p118 = por %p116, %p117
      %p119 = scmp.le.s32.totalorder 1, %s17
      %p120 = scmp.lt.s32.totalorder %s17, 3
      %p121 = pnand %p119, %p120
      %p122 = pneg %p121
      // Predicated region
      $region9: #{tpu_custom_call.1} parent=5 // pred_check
        _
      $region10: #{tpu_custom_call.1} parent=5 // pred_check_branch
        %124 = sbr.rel (%p121) target = $region12
      $region11: #{tpu_custom_call.1} parent=5 // pred_region
        %s125 = ssub.s32 %s17, 1
        // Predicated region
        $region13: #{tpu_custom_call.1} parent=11 // pred_check
          %p126 = pneg %p38
        $region14: #{tpu_custom_call.1} parent=11 // pred_check_branch
          %128 = sbr.rel (%p126) target = $region16
        $region15: #{tpu_custom_call.1} parent=11 // pred_region
          _
        $region16: #{tpu_custom_call.1} parent=11 // pred_fallthru
          _
        // Predicated region
        $region17: #{tpu_custom_call.1} parent=11 // pred_check
          %p129 = pneg %p59
        $region18: #{tpu_custom_call.1} parent=11 // pred_check_branch
          %131 = sbr.rel (%p129) target = $region20
        $region19: #{tpu_custom_call.1} parent=11 // pred_region
          _
        $region20: #{tpu_custom_call.1} parent=11 // pred_fallthru
          _
      $region12: #{tpu_custom_call.1} parent=5 // pred_fallthru
        _
      %p132 = scmp.lt.s32.totalorder %s17, 2
      // Predicated region
      $region21: #{tpu_custom_call.1} parent=5 // pred_check
        %p133 = pneg %p132
      $region22: #{tpu_custom_call.1} parent=5 // pred_check_branch
        %135 = sbr.rel (%p133) target = $region24
      $region23: #{tpu_custom_call.1} parent=5 // pred_region
        // Predicated region
        $region25: #{tpu_custom_call.1} parent=23 // pred_check
          %p136 = pneg %p79
        $region26: #{tpu_custom_call.1} parent=23 // pred_check_branch
          %138 = sbr.rel (%p136) target = $region28
        $region27: #{tpu_custom_call.1} parent=23 // pred_region
          %s139 = sand.u32 %s69, 1
          %s140 = scalar_lea.sflag [#allocation5], %s139
          %s141 = sand.u32 %s69, 1
          %s142 = smul.addr %s141, 96
          %s143 = scalar_lea.vmem [#allocation4], %s142
          %s144 = smul.u32 3, %s17
          %s146 = ssub.s32 1536, 1536
          %147 = vsyncadd %s140, %s146
          %s148 = smul.addr %s144, 4
          %s149 = smul.addr %s148, 128
          %s150 = scalar_lea.hbm %s2, %s149
          %s151 = sshll.u32 %s143, 4
          %s152 = int_to_ptr.vmem [resolvable:$true] %s151
          %157 = dma.hbm_to_vmem [thread:$0]  %s150, 1536, %s152, %s140, 512, 512, 32
        $region28: #{tpu_custom_call.1} parent=23 // pred_fallthru
          _
      $region24: #{tpu_custom_call.1} parent=5 // pred_fallthru
        _
      %p158 = scmp.le.s32.totalorder 1, %s17
      %p159 = scmp.lt.s32.totalorder %s17, 3
      %p160 = pnand %p158, %p159
      %p161 = pneg %p160
      // Predicated region
      $region29: #{tpu_custom_call.1} parent=5 // pred_check
        _
      $region30: #{tpu_custom_call.1} parent=5 // pred_check_branch
        %163 = sbr.rel (%p160) target = $region32
      $region31: #{tpu_custom_call.1} parent=5 // pred_region
        %s164 = ssub.s32 %s17, 1
        %s165 = sand.u32 %s72, 1
        %s166 = scalar_lea.sflag [#allocation5], %s165
        %s167 = sand.u32 %s72, 1
        %s168 = smul.addr %s167, 96
        %s169 = scalar_lea.vmem [#allocation4], %s168
        // Predicated region
        $region33: #{tpu_custom_call.1} parent=31 // pred_check
          %p170 = pneg %p85
        $region34: #{tpu_custom_call.1} parent=31 // pred_check_branch
          %172 = sbr.rel (%p170) target = $region36
        $region35: #{tpu_custom_call.1} parent=31 // pred_region
          %173 = dma.done %s166, 1536
        $region36: #{tpu_custom_call.1} parent=31 // pred_fallthru
          _
        %p174 = pneg %p38
        %p175 = pneg %p35
        %p176 = pneg %p59
        %p177 = pneg %p56
        %s178 = sand.u32 %s72, 1
        %s179 = scalar_lea.sflag [#allocation5], %s178
        %s180 = sand.u32 %s72, 1
        %s181 = smul.addr %s180, 96
        %s182 = scalar_lea.vmem [#allocation4], %s181
        %p183 = pneg %p85
        %p184 = pneg %p82
        %p185 = pneg %p111
        %p186 = pneg %p108
        %s187 = sand.u32 %s98, 1
        %s188 = scalar_lea.sflag [#allocation6], %s187
        %s189 = sand.u32 %s98, 1
        %s190 = smul.addr %s189, 96
        %s191 = scalar_lea.vmem [#allocation7], %s190
        %s192 = smul.u32 3, %s22
        %s193 = smul.u32 3, %s22
        %v194 = vld [vmem:[%s169] sm:$0xff]
        %v195 = vld [vmem:[%s169 + $0x8] sm:$0xff]
        %v196 = vld [vmem:[%s169 + $0x10] sm:$0xff]
        %v197 = vld [vmem:[%s169 + $0x18] sm:$0xff]
        %v198 = vld [vmem:[%s169 + $0x20] sm:$0xff]
        %v199 = vld [vmem:[%s169 + $0x28] sm:$0xff]
        %v200 = vld [vmem:[%s169 + $0x30] sm:$0xff]
        %v201 = vld [vmem:[%s169 + $0x38] sm:$0xff]
        %v202 = vld [vmem:[%s169 + $0x40] sm:$0xff]
        %v203 = vld [vmem:[%s169 + $0x48] sm:$0xff]
        %v204 = vld [vmem:[%s169 + $0x50] sm:$0xff]
        %v205 = vld [vmem:[%s169 + $0x58] sm:$0xff]
        %s206 = sld [smem:[#allocation2]]
        %v207 = vstv %s206
        %v208 = vmul.f32 %v194, %v207
        %v209 = vmul.f32 %v195, %v207
        %v210 = vmul.f32 %v196, %v207
        %v211 = vmul.f32 %v197, %v207
        %v212 = vmul.f32 %v198, %v207
        %v213 = vmul.f32 %v199, %v207
        %v214 = vmul.f32 %v200, %v207
        %v215 = vmul.f32 %v201, %v207
        %v216 = vmul.f32 %v202, %v207
        %v217 = vmul.f32 %v203, %v207
        %v218 = vmul.f32 %v204, %v207
        %v219 = vmul.f32 %v205, %v207
        %s220 = sld [smem:[#allocation3]]
        %v221 = vstv %s220
        %v222 = vadd.f32 %v208, %v221
        %v223 = vadd.f32 %v209, %v221
        %v224 = vadd.f32 %v210, %v221
        %v225 = vadd.f32 %v211, %v221
        %v226 = vadd.f32 %v212, %v221
        %v227 = vadd.f32 %v213, %v221
        %v228 = vadd.f32 %v214, %v221
        %v229 = vadd.f32 %v215, %v221
        %v230 = vadd.f32 %v216, %v221
        %v231 = vadd.f32 %v217, %v221
        %v232 = vadd.f32 %v218, %v221
        %v233 = vadd.f32 %v219, %v221
        %234 = vst [vmem:[%s191] sm:$0xff] %v222
        %235 = vst [vmem:[%s191 + $0x8] sm:$0xff] %v223
        %236 = vst [vmem:[%s191 + $0x10] sm:$0xff] %v224
        %237 = vst [vmem:[%s191 + $0x18] sm:$0xff] %v225
        %238 = vst [vmem:[%s191 + $0x20] sm:$0xff] %v226
        %239 = vst [vmem:[%s191 + $0x28] sm:$0xff] %v227
        %240 = vst [vmem:[%s191 + $0x30] sm:$0xff] %v228
        %241 = vst [vmem:[%s191 + $0x38] sm:$0xff] %v229
        %242 = vst [vmem:[%s191 + $0x40] sm:$0xff] %v230
        %243 = vst [vmem:[%s191 + $0x48] sm:$0xff] %v231
        %244 = vst [vmem:[%s191 + $0x50] sm:$0xff] %v232
        %245 = vst [vmem:[%s191 + $0x58] sm:$0xff] %v233
        %s246 = sand.u32 %s98, 1
        %s247 = scalar_lea.sflag [#allocation6], %s246
        %s248 = sand.u32 %s98, 1
        %s249 = smul.addr %s248, 96
        %s250 = scalar_lea.vmem [#allocation7], %s249
        // Predicated region
        $region37: #{tpu_custom_call.1} parent=31 // pred_check
          %p251 = pneg %p108
        $region38: #{tpu_custom_call.1} parent=31 // pred_check_branch
          %253 = sbr.rel (%p251) target = $region40
        $region39: #{tpu_custom_call.1} parent=31 // pred_region
          %s254 = smul.u32 3, %s22
          %s256 = ssub.s32 1536, 1536
          %257 = vsyncadd %s247, %s256
          %s258 = smul.addr %s254, 4
          %s259 = smul.addr %s258, 128
          %s260 = scalar_lea.hbm %s3, %s259
          %s261 = sshll.u32 %s250, 4
          %s262 = int_to_ptr.vmem [resolvable:$true] %s261
          %267 = dma.vmem_to_hbm [thread:$0]  %s262, 1536, %s260, %s247, 512, 512, 32
        $region40: #{tpu_custom_call.1} parent=31 // pred_fallthru
          _
      $region32: #{tpu_custom_call.1} parent=5 // pred_fallthru
        _
      %p268 = scmp.le.s32.totalorder 2, %s17
      // Predicated region
      $region41: #{tpu_custom_call.1} parent=5 // pred_check
        %p269 = pneg %p268
      $region42: #{tpu_custom_call.1} parent=5 // pred_check_branch
        %271 = sbr.rel (%p269) target = $region44
      $region43: #{tpu_custom_call.1} parent=5 // pred_region
        %s272 = ssub.s32 %s17, 2
        // Predicated region
        $region45: #{tpu_custom_call.1} parent=43 // pred_check
          %p273 = pneg %p114
        $region46: #{tpu_custom_call.1} parent=43 // pred_check_branch
          %275 = sbr.rel (%p273) target = $region48
        $region47: #{tpu_custom_call.1} parent=43 // pred_region
          %s276 = sand.u32 %s99, 1
          %s277 = scalar_lea.sflag [#allocation6], %s276
          %s278 = sand.u32 %s99, 1
          %s279 = smul.addr %s278, 96
          %s280 = scalar_lea.vmem [#allocation7], %s279
          %281 = dma.done %s277, 1536
        $region48: #{tpu_custom_call.1} parent=43 // pred_fallthru
          _
      $region44: #{tpu_custom_call.1} parent=5 // pred_fallthru
        _
    $region6: #{tpu_custom_call.1} parent=1 // loop_footer
      %s21 = sadd.s32 1, %s17
    $region7: #{tpu_custom_call.1} parent=1 // loop_footer_branch
      %16 = sbr.rel target = $region3
    $region8: #{tpu_custom_call.1} parent=1 // loop_exit
      _
    %282 = vsyncpa [#allocation5], 1
    %s283 = scalar_lea.sflag [#allocation5], 1
    %284 = vsyncpa %s283, 1
    %285 = vsyncpa [#allocation6], 1
    %s286 = scalar_lea.sflag [#allocation6], 1
    %287 = vsyncpa %s286, 1

</llo_original>
